<compile_context>
chip_gen: v7x
topology: tpu7x:2x2x1
jax: 0.10.0
libtpu: 0.0.40
codegen_flags: <defaults>
</compile_context>

<pallas_src>
import functools

import jax
import jax.numpy as jnp
from jax import lax
from jax.experimental import pallas as pl
from jax.experimental.pallas import tpu as pltpu

VOCAB = 128       # vocabulary size (lane-aligned)
HIDDEN = 32       # model hidden size
IGNORE_INDEX = -100


def ce_loss_kernel(x_ref, w_ref, t_ref, out_ref, *, tile_n, n_rows):
    """One row-tile: logits = x @ W (MXU), masked NLL, lane-dense partial sum."""
    i = pl.program_id(0)

    # bf16 x bf16 -> f32 accumulation on the MXU; no per-step operand casts.
    logits = jnp.dot(x_ref[...], w_ref[...],
                     preferred_element_type=jnp.float32)        # (tile_n, V) f32

    # Fused stable softmax statistics: reuse (logits - m) for both the exp-sum
    # and the one-hot target select.
    m = jnp.max(logits, axis=-1, keepdims=True)                 # (tile_n, 1)
    shifted = logits - m
    sum_exp = jnp.sum(jnp.exp(shifted), axis=-1, keepdims=True)  # (tile_n, 1)

    tgt = t_ref[...]                                            # (tile_n, 1) i32
    vocab_ids = lax.broadcasted_iota(jnp.int32, shifted.shape, 1)
    tgt_shifted = jnp.sum(jnp.where(vocab_ids == tgt, shifted, 0.0),
                          axis=-1, keepdims=True)               # (tile_n, 1)

    nll = jnp.log(sum_exp) - tgt_shifted                        # (tile_n, 1)

    # Mask padded rows (ragged N) and ignore_index targets.
    row_ids = lax.broadcasted_iota(jnp.int32, (tile_n, 1), 0)
    valid = ((i * tile_n + row_ids) < n_rows) & (tgt != IGNORE_INDEX)

    tile_sum = jnp.sum(jnp.where(valid, nll, 0.0)).reshape(1, 1)
    # Lane-dense, (8,128)-aligned output block -> unmasked vector stores; the
    # wrapper reads out[:, 0, 0] for the cross-tile reduction.
    out_ref[0] = jnp.broadcast_to(tile_sum, (8, 128))


def t5_loss(input_ids, target_ids, emb_table, lm_head, *, tile_n=256):
    """Mean LM cross-entropy over non-ignored tokens (torch-style CE)."""
    B, S = input_ids.shape
    N = B * S
    num_tiles = -(-N // tile_n)
    n_pad = num_tiles * tile_n - N

    flat_in = jnp.pad(input_ids.reshape(-1).astype(jnp.int32), (0, n_pad))
    flat_tgt = jnp.pad(target_ids.reshape(-1).astype(jnp.int32), (0, n_pad),
                       constant_values=IGNORE_INDEX).reshape(-1, 1)

    # Embedding lookup in bf16 (halves HBM traffic of the (N, H) activations).
    # TODO(synk): at very large N, fuse this row gather into the kernel via
    # scalar prefetch instead of materializing x in HBM.
    x = jnp.take(emb_table.astype(jnp.bfloat16), flat_in, axis=0)   # (N_pad, H)
    w = lm_head.astype(jnp.bfloat16)                                # (H, V)

    kernel = functools.partial(ce_loss_kernel, tile_n=tile_n, n_rows=N)

    partial_sums = pl.pallas_call(
        kernel,
        out_shape=jax.ShapeDtypeStruct((num_tiles, 8, 128), jnp.float32),
        grid_spec=pltpu.PrefetchScalarGridSpec(
            num_scalar_prefetch=0,
            grid=(num_tiles,),
            in_specs=[
                pl.BlockSpec((tile_n, HIDDEN), lambda i: (i, 0)),
                # Resident weight block (constant index_map).  At real vocab
                # sizes mark it pipeline_mode=pl.Buffered(1) to drop the
                # redundant second buffer.
                pl.BlockSpec((HIDDEN, VOCAB), lambda i: (0, 0)),
                pl.BlockSpec((tile_n, 1), lambda i: (i, 0)),
            ],
            out_specs=pl.BlockSpec((1, 8, 128), lambda i: (i, 0, 0)),
        ),
        compiler_params=pltpu.CompilerParams(
            dimension_semantics=("parallel",)),
    )(x, w, flat_tgt)

    total = jnp.sum(partial_sums[:, 0, 0])
    n_valid = jnp.sum(target_ids.reshape(-1).astype(jnp.int32) != IGNORE_INDEX)
    return total / jnp.maximum(n_valid, 1).astype(jnp.float32)


def _reference_loss(input_ids, target_ids, emb_table, lm_head):
    """Pure-JAX reference (same bf16 operand casts as the kernel path)."""
    x = jnp.take(emb_table.astype(jnp.bfloat16),
                 input_ids.reshape(-1).astype(jnp.int32), axis=0)
    logits = jnp.dot(x, lm_head.astype(jnp.bfloat16),
                     preferred_element_type=jnp.float32)
    logp = jax.nn.log_softmax(logits, axis=-1)
    tgt = target_ids.reshape(-1).astype(jnp.int32)
    valid = tgt != IGNORE_INDEX
    nll = -jnp.take_along_axis(logp, jnp.where(valid, tgt, 0)[:, None],
                               axis=-1)[:, 0]
    nll = jnp.where(valid, nll, 0.0)
    return jnp.sum(nll) / jnp.maximum(jnp.sum(valid), 1).astype(jnp.float32)


if __name__ == "__main__":
    key = jax.random.PRNGKey(0)
    k_emb, k_head, k_in, k_tgt = jax.random.split(key, 4)

    emb_table = 0.02 * jax.random.normal(k_emb, (VOCAB, HIDDEN), jnp.float32)
    lm_head = 0.02 * jax.random.normal(k_head, (HIDDEN, VOCAB), jnp.float32)

    # Small shapes consistent with the module (batch=2, seq=8).
    batch, seq = 2, 8
    input_ids = jax.random.randint(k_in, (batch, seq), 0, VOCAB, jnp.int32)
    target_ids = jax.random.randint(k_tgt, (batch, seq), 0, VOCAB, jnp.int32)

    loss = jax.block_until_ready(
        t5_loss(input_ids, target_ids, emb_table, lm_head))
    ref = _reference_loss(input_ids, target_ids, emb_table, lm_head)
    assert jnp.allclose(loss, ref, rtol=1e-4, atol=1e-4), (loss, ref)

    # Multi-tile + ragged-N + ignore_index exercise (still small / fast).
    k_in2, k_tgt2 = jax.random.split(k_in)
    b2, s2 = 3, 100                              # N=300 -> 2 tiles, masked tail
    in2 = jax.random.randint(k_in2, (b2, s2), 0, VOCAB, jnp.int32)
    tgt2 = jax.random.randint(k_tgt2, (b2, s2), 0, VOCAB, jnp.int32)
    tgt2 = tgt2.at[0, :7].set(IGNORE_INDEX)      # padding tokens
    loss2 = jax.block_until_ready(t5_loss(in2, tgt2, emb_table, lm_head))
    ref2 = _reference_loss(in2, tgt2, emb_table, lm_head)
    assert jnp.allclose(loss2, ref2, rtol=1e-4, atol=1e-4), (loss2, ref2)

    print("KERNEL_OK")
</pallas_src>

<mosaic_0001>
module attributes {stable_mosaic.version = 11 : i64} {
  func.func @ce_loss_kernel(%arg0: i32, %arg1: memref<256x32xbf16, #tpu.memory_space<vmem>>, %arg2: memref<32x128xbf16, #tpu.memory_space<vmem>>, %arg3: memref<256x1xi32, #tpu.memory_space<vmem>>, %arg4: memref<1x8x128xf32, #tpu.memory_space<vmem>>) attributes {dimension_semantics = [#tpu.dimension_semantics<parallel>], iteration_bounds = array<i64: 1>, scalar_prefetch = 0 : i64, scratch_operands = 0 : i64, tpu.core_type = #tpu.core_type<tc>, window_params = [{transform_indices = @transform_0, window_bounds = array<i64: 256, 32>}, {pipeline_mode = #tpu.pipeline_mode<synchronous>, transform_indices = @transform_1, window_bounds = array<i64: 32, 128>}, {transform_indices = @transform_2, window_bounds = array<i64: 256, 1>}, {transform_indices = @transform_3, window_bounds = array<i64: 1, 8, 128>}]} {
    %c0 = arith.constant 0 : index
    %c0_0 = arith.constant 0 : index
    %0 = vector.load %arg1[%c0, %c0_0] : memref<256x32xbf16, #tpu.memory_space<vmem>>, vector<256x32xbf16>
    %c0_1 = arith.constant 0 : index
    %c0_2 = arith.constant 0 : index
    %1 = vector.load %arg2[%c0_1, %c0_2] : memref<32x128xbf16, #tpu.memory_space<vmem>>, vector<32x128xbf16>
    %cst = arith.constant dense<0.000000e+00> : vector<256x128xf32>
    %2 = tpu.matmul %0, %1, %cst {dimension_numbers = #tpu.dot_dimension_numbers<[1], [0], [0], [1], [0, 0, 1, 1], [], []>} : vector<256x32xbf16>, vector<32x128xbf16>, vector<256x128xf32> -> vector<256x128xf32>
    %cst_3 = arith.constant dense<0xFF800000> : vector<256xf32>
    %3 = vector.multi_reduction <maximumf>, %2, %cst_3 [1] : vector<256x128xf32> to vector<256xf32>
    %4 = vector.shape_cast %3 : vector<256xf32> to vector<256x1xf32>
    %5 = vector.broadcast %4 : vector<256x1xf32> to vector<256x128xf32>
    %6 = arith.subf %2, %5 : vector<256x128xf32>
    %7 = math.exp %6 : vector<256x128xf32>
    %cst_4 = arith.constant dense<0.000000e+00> : vector<256xf32>
    %8 = vector.multi_reduction <add>, %7, %cst_4 [1] : vector<256x128xf32> to vector<256xf32>
    %9 = vector.shape_cast %8 : vector<256xf32> to vector<256x1xf32>
    %c0_5 = arith.constant 0 : index
    %c0_6 = arith.constant 0 : index
    %10 = vector.load %arg3[%c0_5, %c0_6] : memref<256x1xi32, #tpu.memory_space<vmem>>, vector<256x1xi32>
    %11 = tpu.iota {dimensions = array<i32: 1>} : vector<256x128xi32>
    %12 = vector.broadcast %10 : vector<256x1xi32> to vector<256x128xi32>
    %13 = arith.cmpi eq, %11, %12 : vector<256x128xi32>
    %cst_7 = arith.constant 0.000000e+00 : f32
    %14 = vector.broadcast %cst_7 : f32 to vector<256x128xf32>
    %15 = arith.select %13, %6, %14 : vector<256x128xi1>, vector<256x128xf32>
    %cst_8 = arith.constant dense<0.000000e+00> : vector<256xf32>
    %16 = vector.multi_reduction <add>, %15, %cst_8 [1] : vector<256x128xf32> to vector<256xf32>
    %17 = vector.shape_cast %16 : vector<256xf32> to vector<256x1xf32>
    %18 = math.log %9 : vector<256x1xf32>
    %19 = arith.subf %18, %17 : vector<256x1xf32>
    %20 = tpu.iota {dimensions = array<i32: 0>} : vector<256x1xi32>
    %c256_i32 = arith.constant 256 : i32
    %21 = arith.muli %arg0, %c256_i32 : i32
    %22 = vector.broadcast %21 : i32 to vector<256x1xi32>
    %23 = arith.addi %22, %20 : vector<256x1xi32>
    %c16_i32 = arith.constant 16 : i32
    %24 = vector.broadcast %c16_i32 : i32 to vector<256x1xi32>
    %25 = arith.cmpi slt, %23, %24 : vector<256x1xi32>
    %c-100_i32 = arith.constant -100 : i32
    %26 = vector.broadcast %c-100_i32 : i32 to vector<256x1xi32>
    %27 = arith.cmpi ne, %10, %26 : vector<256x1xi32>
    %28 = arith.andi %25, %27 : vector<256x1xi1>
    %cst_9 = arith.constant 0.000000e+00 : f32
    %29 = vector.broadcast %cst_9 : f32 to vector<256x1xf32>
    %30 = arith.select %28, %19, %29 : vector<256x1xi1>, vector<256x1xf32>
    %31 = vector.shape_cast %30 : vector<256x1xf32> to vector<1x256x1xf32>
    %cst_10 = arith.constant dense<0.000000e+00> : vector<1xf32>
    %32 = vector.multi_reduction <add>, %31, %cst_10 [1, 2] : vector<1x256x1xf32> to vector<1xf32>
    %33 = vector.shape_cast %32 : vector<1xf32> to vector<1x1x1xf32>
    %34 = vector.extract %33[0, 0, 0] : f32 from vector<1x1x1xf32>
    %35 = vector.broadcast %34 : f32 to vector<1x1xf32>
    %36 = vector.shape_cast %35 : vector<1x1xf32> to vector<1x1xf32>
    %37 = vector.broadcast %36 : vector<1x1xf32> to vector<8x128xf32>
    %c0_11 = arith.constant 0 : index
    %c0_12 = arith.constant 0 : index
    %c0_13 = arith.constant 0 : index
    %38 = vector.load %arg4[%c0_11, %c0_12, %c0_13] : memref<1x8x128xf32, #tpu.memory_space<vmem>>, vector<1x8x128xf32>
    %39 = vector.shape_cast %38 : vector<1x8x128xf32> to vector<8x128xf32>
    %40 = vector.shape_cast %37 : vector<8x128xf32> to vector<1x8x128xf32>
    tpu.vector_store %arg4[%c0_11, %c0_12, %c0_13], %40 {strides = array<i32>} : memref<1x8x128xf32, #tpu.memory_space<vmem>>, vector<1x8x128xf32>,
    return
  }
  func.func @transform_0(%arg0: i32) -> (i32, i32) {
    %c0_i32 = arith.constant 0 : i32
    %c0_i32_0 = arith.constant 0 : i32
    return %arg0, %c0_i32 : i32, i32
  }
  func.func @transform_1(%arg0: i32) -> (i32, i32) {
    %c0_i32 = arith.constant 0 : i32
    %c0_i32_0 = arith.constant 0 : i32
    %c0_i32_1 = arith.constant 0 : i32
    return %c0_i32, %c0_i32_0 : i32, i32
  }
  func.func @transform_2(%arg0: i32) -> (i32, i32) {
    %c0_i32 = arith.constant 0 : i32
    %c0_i32_0 = arith.constant 0 : i32
    return %arg0, %c0_i32 : i32, i32
  }
  func.func @transform_3(%arg0: i32) -> (i32, i32, i32) {
    %c0_i32 = arith.constant 0 : i32
    %c0_i32_0 = arith.constant 0 : i32
    %c0_i32_1 = arith.constant 0 : i32
    return %arg0, %c0_i32, %c0_i32_0 : i32, i32, i32
  }
}

</mosaic_0001>

<llo_original>
// kernel: tpu_custom_call.1
$region0: #{tpu_custom_call.1}
  #allocation0 [shape = 'u32[]', space=smem, size = 0x4, offset = 0x4, fixed_abs, tag = 'smem constant byte address 0x4 - core index']
  #allocation1 [shape = 'u32[144,128]{1,0:T(1,128)}', space=vmem, size = 0x12000, scoped, tag = 'internal scratch']
  %s0 = inlined_call_operand.vmem [shape: bf16[256,32], index: 0, kind: input, shape index: {}]
  %s1 = inlined_call_operand.vmem [shape: bf16[32,128], index: 1, kind: input, shape index: {}]
  %s2 = inlined_call_operand.vmem [shape: s32[256,1], index: 2, kind: input, shape index: {}]
  %s3 = inlined_call_operand.hbm [shape: f32[1,8,128], index: 3, kind: output, shape index: {}]
  %s4 = sld [smem:[#allocation0]]
  $region22: #{tpu_custom_call.1} parent=0
    _
  %s6 = ssub.s32 1, %s4
  %s7 = scalar_select 0, %s6, %s4
  $region1: #{tpu_custom_call.1} parent=0
    #allocation2 [shape = 'u8[4096]{0}', space=vmem, size = 0x1000, scoped, tag = 'output window, operand 0, single buffered']
    #allocation3 [shape = 's32[1]{0}', space=sflag, size = 0x4, scoped, tag = 'scoped memory for tpu_custom_call.1']
    %8 = vsyncpa [#allocation3], 0
    // Predicated region
    $region2: #{tpu_custom_call.1} parent=1 // pred_check
      _
    $region3: #{tpu_custom_call.1} parent=1 // pred_check_branch
      %10 = sbr.rel (0) target = $region5
    $region4: #{tpu_custom_call.1} parent=1 // pred_region
      _
    $region5: #{tpu_custom_call.1} parent=1 // pred_fallthru
      _
    // Predicated region
    $region6: #{tpu_custom_call.1} parent=1 // pred_check
      _
    $region7: #{tpu_custom_call.1} parent=1 // pred_check_branch
      %12 = sbr.rel (0) target = $region9
    $region8: #{tpu_custom_call.1} parent=1 // pred_region
      _
    $region9: #{tpu_custom_call.1} parent=1 // pred_fallthru
      _
    // Predicated region
    $region10: #{tpu_custom_call.1} parent=1 // pred_check
      _
    $region11: #{tpu_custom_call.1} parent=1 // pred_check_branch
      %14 = sbr.rel (0) target = $region13
    $region12: #{tpu_custom_call.1} parent=1 // pred_region
      _
    $region13: #{tpu_custom_call.1} parent=1 // pred_fallthru
      _
    %v16 = vld [vmem:[%s0] sm:$0xf]
    %v17 = vld [vmem:[%s0 + $0x4] sm:$0xf]
    %v18 = vld [vmem:[%s0 + $0x8] sm:$0xf]
    %v19 = vld [vmem:[%s0 + $0xc] sm:$0xf]
    %v20 = vld [vmem:[%s0 + $0x10] sm:$0xf]
    %v21 = vld [vmem:[%s0 + $0x14] sm:$0xf]
    %v22 = vld [vmem:[%s0 + $0x18] sm:$0xf]
    %v23 = vld [vmem:[%s0 + $0x1c] sm:$0xf]
    %v24 = vld [vmem:[%s0 + $0x20] sm:$0xf]
    %v25 = vld [vmem:[%s0 + $0x24] sm:$0xf]
    %v26 = vld [vmem:[%s0 + $0x28] sm:$0xf]
    %v27 = vld [vmem:[%s0 + $0x2c] sm:$0xf]
    %v28 = vld [vmem:[%s0 + $0x30] sm:$0xf]
    %v29 = vld [vmem:[%s0 + $0x34] sm:$0xf]
    %v30 = vld [vmem:[%s0 + $0x38] sm:$0xf]
    %v31 = vld [vmem:[%s0 + $0x3c] sm:$0xf]
    %v32 = vld [vmem:[%s0 + $0x40] sm:$0xf]
    %v33 = vld [vmem:[%s0 + $0x44] sm:$0xf]
    %v34 = vld [vmem:[%s0 + $0x48] sm:$0xf]
    %v35 = vld [vmem:[%s0 + $0x4c] sm:$0xf]
    %v36 = vld [vmem:[%s0 + $0x50] sm:$0xf]
    %v37 = vld [vmem:[%s0 + $0x54] sm:$0xf]
    %v38 = vld [vmem:[%s0 + $0x58] sm:$0xf]
    %v39 = vld [vmem:[%s0 + $0x5c] sm:$0xf]
    %v40 = vld [vmem:[%s0 + $0x60] sm:$0xf]
    %v41 = vld [vmem:[%s0 + $0x64] sm:$0xf]
    %v42 = vld [vmem:[%s0 + $0x68] sm:$0xf]
    %v43 = vld [vmem:[%s0 + $0x6c] sm:$0xf]
    %v44 = vld [vmem:[%s0 + $0x70] sm:$0xf]
    %v45 = vld [vmem:[%s0 + $0x74] sm:$0xf]
    %v46 = vld [vmem:[%s0 + $0x78] sm:$0xf]
    %v47 = vld [vmem:[%s0 + $0x7c] sm:$0xf]
    %v48 = vld [vmem:[%s1] sm:$0xf]
    %v49 = vld [vmem:[%s1 + $0x4] sm:$0xf]
    %v50 = vld [vmem:[%s1 + $0x8] sm:$0xf]
    %v51 = vld [vmem:[%s1 + $0xc] sm:$0xf]
    %v84 = vunpack.c.l.b16 %v16
    %v85 = vunpack.c.l.b16 %v17
    %v86 = vunpack.c.l.b16 %v18
    %v87 = vunpack.c.l.b16 %v19
    %v88 = vunpack.c.l.b16 %v20
    %v89 = vunpack.c.l.b16 %v21
    %v90 = vunpack.c.l.b16 %v22
    %v91 = vunpack.c.l.b16 %v23
    %v92 = vunpack.c.l.b16 %v24
    %v93 = vunpack.c.l.b16 %v25
    %v94 = vunpack.c.l.b16 %v26
    %v95 = vunpack.c.l.b16 %v27
    %v96 = vunpack.c.l.b16 %v28
    %v97 = vunpack.c.l.b16 %v29
    %v98 = vunpack.c.l.b16 %v30
    %v99 = vunpack.c.l.b16 %v31
    %v100 = vunpack.c.l.b16 %v32
    %v101 = vunpack.c.l.b16 %v33
    %v102 = vunpack.c.l.b16 %v34
    %v103 = vunpack.c.l.b16 %v35
    %v104 = vunpack.c.l.b16 %v36
    %v105 = vunpack.c.l.b16 %v37
    %v106 = vunpack.c.l.b16 %v38
    %v107 = vunpack.c.l.b16 %v39
    %v108 = vunpack.c.l.b16 %v40
    %v109 = vunpack.c.l.b16 %v41
    %v110 = vunpack.c.l.b16 %v42
    %v111 = vunpack.c.l.b16 %v43
    %v112 = vunpack.c.l.b16 %v44
    %v113 = vunpack.c.l.b16 %v45
    %v114 = vunpack.c.l.b16 %v46
    %v115 = vunpack.c.l.b16 %v47
    %v116 = vpack.c.b16 %v85, %v84
    %v117 = vpack.c.b16 %v87, %v86
    %v118 = vpack.c.b16 %v89, %v88
    %v119 = vpack.c.b16 %v91, %v90
    %v120 = vpack.c.b16 %v93, %v92
    %v121 = vpack.c.b16 %v95, %v94
    %v122 = vpack.c.b16 %v97, %v96
    %v123 = vpack.c.b16 %v99, %v98
    %v124 = vpack.c.b16 %v101, %v100
    %v125 = vpack.c.b16 %v103, %v102
    %v126 = vpack.c.b16 %v105, %v104
    %v127 = vpack.c.b16 %v107, %v106
    %v128 = vpack.c.b16 %v109, %v108
    %v129 = vpack.c.b16 %v111, %v110
    %v130 = vpack.c.b16 %v113, %v112
    %v131 = vpack.c.b16 %v115, %v114
    %v136 = vunpack.c.l.b16 %v48
    %v137 = vunpack.c.l.b16 %v49
    %v138 = vunpack.c.l.b16 %v50
    %v139 = vunpack.c.l.b16 %v51
    %v140 = vpack.c.b16 %v137, %v136
    %v141 = vpack.c.b16 %v139, %v138
    %vm144 = vcmask 261120
    %v146 = vsel %vm144, %v116, 0
    %v149 = vsel %vm144, %v117, 0
    %v152 = vsel %vm144, %v118, 0
    %v155 = vsel %vm144, %v119, 0
    %v158 = vsel %vm144, %v120, 0
    %v161 = vsel %vm144, %v121, 0
    %v164 = vsel %vm144, %v122, 0
    %v167 = vsel %vm144, %v123, 0
    %v170 = vsel %vm144, %v124, 0
    %v173 = vsel %vm144, %v125, 0
    %v176 = vsel %vm144, %v126, 0
    %v179 = vsel %vm144, %v127, 0
    %v182 = vsel %vm144, %v128, 0
    %v185 = vsel %vm144, %v129, 0
    %v188 = vsel %vm144, %v130, 0
    %v191 = vsel %vm144, %v131, 0
    %193 = vmatprep.subr.bf16.mxu0 0
    %194 = vmatpush1.bf16.msra.mxu0 %v140
    %195 = vmatprep.subr.bf16.mxu0 0
    %196 = vmatpush1.bf16.msra.mxu0 %v141
    %197 = vmatprep.subr.bf16.mxu0 0
    %198 = vmatpush1.bf16.msra.mxu0 0
    %199 = vmatprep.subr.bf16.mxu0 0
    %200 = vmatpush1.bf16.msra.mxu0 0
    %201 = vmatprep.subr.bf16.mxu0 0
    %202 = vmatpush1.bf16.msra.mxu0 0
    %203 = vmatprep.subr.bf16.mxu0 0
    %204 = vmatpush1.bf16.msra.mxu0 0
    %205 = vmatprep.subr.bf16.mxu0 0
    %206 = vmatpush1.bf16.msra.mxu0 0
    %207 = vmatprep.subr.bf16.mxu0 0
    %208 = vmatpush1.bf16.msra.mxu0 0
    %209 = vmatprep.subr.bf16.mxu0 0
    %210 = vmatpush1.bf16.msra.mxu0 0
    %211 = vmatprep.subr.bf16.mxu0 0
    %212 = vmatpush1.bf16.msra.mxu0 0
    %213 = vmatprep.subr.bf16.mxu0 0
    %214 = vmatpush1.bf16.msra.mxu0 0
    %215 = vmatprep.subr.bf16.mxu0 0
    %216 = vmatpush1.bf16.msra.mxu0 0
    %217 = vmatprep.subr.bf16.mxu0 0
    %218 = vmatpush1.bf16.msra.mxu0 0
    %219 = vmatprep.subr.bf16.mxu0 0
    %220 = vmatpush1.bf16.msra.mxu0 0
    %221 = vmatprep.subr.bf16.mxu0 0
    %222 = vmatpush1.bf16.msra.mxu0 0
    %223 = vmatprep.subr.bf16.mxu0 0
    %224 = vmatpush1.bf16.msra.mxu0 0
    %225 = vmatprep.mubr.bf16.mxu0 0
    %226 = vmatmul.mubr.bf16.gmra.mrb[0].mxu0 %v146
    %v227 = vpop.f32.mrb[0].mxu0
    %v228 = vadd.f32 0.0, %v227
    %v229 = vpop.f32.mrb[0].mxu0
    %v230 = vpop.f32.mrb[0].mxu0
    %v231 = vadd.f32 0.0, %v230
    %v232 = vpop.f32.mrb[0].mxu0
    %233 = vmatprep.mubr.bf16.mxu0 0
    %234 = vmatmul.mubr.bf16.gmra.mrb[0].mxu0 %v149
    %v235 = vpop.f32.mrb[0].mxu0
    %v236 = vadd.f32 0.0, %v235
    %v237 = vpop.f32.mrb[0].mxu0
    %v238 = vpop.f32.mrb[0].mxu0
    %v239 = vadd.f32 0.0, %v238
    %v240 = vpop.f32.mrb[0].mxu0
    %241 = vmatprep.mubr.bf16.mxu0 0
    %242 = vmatmul.mubr.bf16.gmra.mrb[0].mxu0 %v152
    %v243 = vpop.f32.mrb[0].mxu0
    %v244 = vadd.f32 0.0, %v243
    %v245 = vpop.f32.mrb[0].mxu0
    %v246 = vpop.f32.mrb[0].mxu0
    %v247 = vadd.f32 0.0, %v246
    %v248 = vpop.f32.mrb[0].mxu0
    %249 = vmatprep.mubr.bf16.mxu0 0
    %250 = vmatmul.mubr.bf16.gmra.mrb[0].mxu0 %v155
    %v251 = vpop.f32.mrb[0].mxu0
    %v252 = vadd.f32 0.0, %v251
    %v253 = vpop.f32.mrb[0].mxu0
    %v254 = vpop.f32.mrb[0].mxu0
    %v255 = vadd.f32 0.0, %v254
    %v256 = vpop.f32.mrb[0].mxu0
    %257 = vmatprep.mubr.bf16.mxu0 0
    %258 = vmatmul.mubr.bf16.gmra.mrb[0].mxu0 %v158
    %v259 = vpop.f32.mrb[0].mxu0
    %v260 = vadd.f32 0.0, %v259
    %v261 = vpop.f32.mrb[0].mxu0
    %v262 = vpop.f32.mrb[0].mxu0
    %v263 = vadd.f32 0.0, %v262
    %v264 = vpop.f32.mrb[0].mxu0
    %265 = vmatprep.mubr.bf16.mxu0 0
    %266 = vmatmul.mubr.bf16.gmra.mrb[0].mxu0 %v161
    %v267 = vpop.f32.mrb[0].mxu0
    %v268 = vadd.f32 0.0, %v267
    %v269 = vpop.f32.mrb[0].mxu0
    %v270 = vpop.f32.mrb[0].mxu0
    %v271 = vadd.f32 0.0, %v270
    %v272 = vpop.f32.mrb[0].mxu0
    %273 = vmatprep.mubr.bf16.mxu0 0
    %274 = vmatmul.mubr.bf16.gmra.mrb[0].mxu0 %v164
    %v275 = vpop.f32.mrb[0].mxu0
    %v276 = vadd.f32 0.0, %v275
    %v277 = vpop.f32.mrb[0].mxu0
    %v278 = vpop.f32.mrb[0].mxu0
    %v279 = vadd.f32 0.0, %v278
    %v280 = vpop.f32.mrb[0].mxu0
    %281 = vmatprep.mubr.bf16.mxu0 0
    %282 = vmatmul.mubr.bf16.gmra.mrb[0].mxu0 %v167
    %v283 = vpop.f32.mrb[0].mxu0
    %v284 = vadd.f32 0.0, %v283
    %v285 = vpop.f32.mrb[0].mxu0
    %v286 = vpop.f32.mrb[0].mxu0
    %v287 = vadd.f32 0.0, %v286
    %v288 = vpop.f32.mrb[0].mxu0
    %289 = vmatprep.mubr.bf16.mxu0 0
    %290 = vmatmul.mubr.bf16.gmra.mrb[0].mxu0 %v170
    %v291 = vpop.f32.mrb[0].mxu0
    %v292 = vadd.f32 0.0, %v291
    %v293 = vpop.f32.mrb[0].mxu0
    %v294 = vpop.f32.mrb[0].mxu0
    %v295 = vadd.f32 0.0, %v294
    %v296 = vpop.f32.mrb[0].mxu0
    %297 = vmatprep.mubr.bf16.mxu0 0
    %298 = vmatmul.mubr.bf16.gmra.mrb[0].mxu0 %v173
    %v299 = vpop.f32.mrb[0].mxu0
    %v300 = vadd.f32 0.0, %v299
    %v301 = vpop.f32.mrb[0].mxu0
    %v302 = vpop.f32.mrb[0].mxu0
    %v303 = vadd.f32 0.0, %v302
    %v304 = vpop.f32.mrb[0].mxu0
    %305 = vmatprep.mubr.bf16.mxu0 0
    %306 = vmatmul.mubr.bf16.gmra.mrb[0].mxu0 %v176
    %v307 = vpop.f32.mrb[0].mxu0
    %v308 = vadd.f32 0.0, %v307
    %v309 = vpop.f32.mrb[0].mxu0
    %v310 = vpop.f32.mrb[0].mxu0
    %v311 = vadd.f32 0.0, %v310
    %v312 = vpop.f32.mrb[0].mxu0
    %313 = vmatprep.mubr.bf16.mxu0 0
    %314 = vmatmul.mubr.bf16.gmra.mrb[0].mxu0 %v179
    %v315 = vpop.f32.mrb[0].mxu0
    %v316 = vadd.f32 0.0, %v315
    %v317 = vpop.f32.mrb[0].mxu0
    %v318 = vpop.f32.mrb[0].mxu0
    %v319 = vadd.f32 0.0, %v318
    %v320 = vpop.f32.mrb[0].mxu0
    %321 = vmatprep.mubr.bf16.mxu0 0
    %322 = vmatmul.mubr.bf16.gmra.mrb[0].mxu0 %v182
    %v323 = vpop.f32.mrb[0].mxu0
    %v324 = vadd.f32 0.0, %v323
    %v325 = vpop.f32.mrb[0].mxu0
    %v326 = vpop.f32.mrb[0].mxu0
    %v327 = vadd.f32 0.0, %v326
    %v328 = vpop.f32.mrb[0].mxu0
    %329 = vmatprep.mubr.bf16.mxu0 0
    %330 = vmatmul.mubr.bf16.gmra.mrb[0].mxu0 %v185
    %v331 = vpop.f32.mrb[0].mxu0
    %v332 = vadd.f32 0.0, %v331
    %v333 = vpop.f32.mrb[0].mxu0
    %v334 = vpop.f32.mrb[0].mxu0
    %v335 = vadd.f32 0.0, %v334
    %v336 = vpop.f32.mrb[0].mxu0
    %337 = vmatprep.mubr.bf16.mxu0 0
    %338 = vmatmul.mubr.bf16.gmra.mrb[0].mxu0 %v188
    %v339 = vpop.f32.mrb[0].mxu0
    %v340 = vadd.f32 0.0, %v339
    %v341 = vpop.f32.mrb[0].mxu0
    %v342 = vpop.f32.mrb[0].mxu0
    %v343 = vadd.f32 0.0, %v342
    %v344 = vpop.f32.mrb[0].mxu0
    %345 = vmatprep.mubr.bf16.mxu0 0
    %346 = vmatmul.mubr.bf16.gmra.mrb[0].mxu0 %v191
    %v347 = vpop.f32.mrb[0].mxu0
    %v348 = vadd.f32 0.0, %v347
    %v349 = vpop.f32.mrb[0].mxu0
    %v350 = vpop.f32.mrb[0].mxu0
    %v351 = vadd.f32 0.0, %v350
    %v352 = vpop.f32.mrb[0].mxu0
    %353 = vdwg.mxu0
    %354 = vmax.xlane.f32.xlu0 %v228
    %v355 = vpop.xlane.xlu0 %354
    %356 = vmax.xlane.f32.xlu0 %v231
    %v357 = vpop.xlane.xlu0 %356
    %358 = vmax.xlane.f32.xlu0 %v236
    %v359 = vpop.xlane.xlu0 %358
    %360 = vmax.xlane.f32.xlu0 %v239
    %v361 = vpop.xlane.xlu0 %360
    %362 = vmax.xlane.f32.xlu0 %v244
    %v363 = vpop.xlane.xlu0 %362
    %364 = vmax.xlane.f32.xlu0 %v247
    %v365 = vpop.xlane.xlu0 %364
    %366 = vmax.xlane.f32.xlu0 %v252
    %v367 = vpop.xlane.xlu0 %366
    %368 = vmax.xlane.f32.xlu0 %v255
    %v369 = vpop.xlane.xlu0 %368
    %370 = vmax.xlane.f32.xlu0 %v260
    %v371 = vpop.xlane.xlu0 %370
    %372 = vmax.xlane.f32.xlu0 %v263
    %v373 = vpop.xlane.xlu0 %372
    %374 = vmax.xlane.f32.xlu0 %v268
    %v375 = vpop.xlane.xlu0 %374
    %376 = vmax.xlane.f32.xlu0 %v271
    %v377 = vpop.xlane.xlu0 %376
    %378 = vmax.xlane.f32.xlu0 %v276
    %v379 = vpop.xlane.xlu0 %378
    %380 = vmax.xlane.f32.xlu0 %v279
    %v381 = vpop.xlane.xlu0 %380
    %382 = vmax.xlane.f32.xlu0 %v284
    %v383 = vpop.xlane.xlu0 %382
    %384 = vmax.xlane.f32.xlu0 %v287
    %v385 = vpop.xlane.xlu0 %384
    %386 = vmax.xlane.f32.xlu0 %v292
    %v387 = vpop.xlane.xlu0 %386
    %388 = vmax.xlane.f32.xlu0 %v295
    %v389 = vpop.xlane.xlu0 %388
    %390 = vmax.xlane.f32.xlu0 %v300
    %v391 = vpop.xlane.xlu0 %390
    %392 = vmax.xlane.f32.xlu0 %v303
    %v393 = vpop.xlane.xlu0 %392
    %394 = vmax.xlane.f32.xlu0 %v308
    %v395 = vpop.xlane.xlu0 %394
    %396 = vmax.xlane.f32.xlu0 %v311
    %v397 = vpop.xlane.xlu0 %396
    %398 = vmax.xlane.f32.xlu0 %v316
    %v399 = vpop.xlane.xlu0 %398
    %400 = vmax.xlane.f32.xlu0 %v319
    %v401 = vpop.xlane.xlu0 %400
    %402 = vmax.xlane.f32.xlu0 %v324
    %v403 = vpop.xlane.xlu0 %402
    %404 = vmax.xlane.f32.xlu0 %v327
    %v405 = vpop.xlane.xlu0 %404
    %406 = vmax.xlane.f32.xlu0 %v332
    %v407 = vpop.xlane.xlu0 %406
    %408 = vmax.xlane.f32.xlu0 %v335
    %v409 = vpop.xlane.xlu0 %408
    %410 = vmax.xlane.f32.xlu0 %v340
    %v411 = vpop.xlane.xlu0 %410
    %412 = vmax.xlane.f32.xlu0 %v343
    %v413 = vpop.xlane.xlu0 %412
    %414 = vmax.xlane.f32.xlu0 %v348
    %v415 = vpop.xlane.xlu0 %414
    %416 = vmax.xlane.f32.xlu0 %v351
    %v417 = vpop.xlane.xlu0 %416
    %v418 = vsub.f32 %v228, %v355
    %v419 = vsub.f32 %v231, %v357
    %v420 = vsub.f32 %v236, %v359
    %v421 = vsub.f32 %v239, %v361
    %v422 = vsub.f32 %v244, %v363
    %v423 = vsub.f32 %v247, %v365
    %v424 = vsub.f32 %v252, %v367
    %v425 = vsub.f32 %v255, %v369
    %v426 = vsub.f32 %v260, %v371
    %v427 = vsub.f32 %v263, %v373
    %v428 = vsub.f32 %v268, %v375
    %v429 = vsub.f32 %v271, %v377
    %v430 = vsub.f32 %v276, %v379
    %v431 = vsub.f32 %v279, %v381
    %v432 = vsub.f32 %v284, %v383
    %v433 = vsub.f32 %v287, %v385
    %v434 = vsub.f32 %v292, %v387
    %v435 = vsub.f32 %v295, %v389
    %v436 = vsub.f32 %v300, %v391
    %v437 = vsub.f32 %v303, %v393
    %v438 = vsub.f32 %v308, %v395
    %v439 = vsub.f32 %v311, %v397
    %v440 = vsub.f32 %v316, %v399
    %v441 = vsub.f32 %v319, %v401
    %v442 = vsub.f32 %v324, %v403
    %v443 = vsub.f32 %v327, %v405
    %v444 = vsub.f32 %v332, %v407
    %v445 = vsub.f32 %v335, %v409
    %v446 = vsub.f32 %v340, %v411
    %v447 = vsub.f32 %v343, %v413
    %v448 = vsub.f32 %v348, %v415
    %v449 = vsub.f32 %v351, %v417
    %v450 = vmul.f32 %v418, 1.442695
    %v451 = vpow.pop %v450
    %v452 = vmul.f32 %v419, 1.442695
    %v453 = vpow.pop %v452
    %v454 = vmul.f32 %v420, 1.442695
    %v455 = vpow.pop %v454
    %v456 = vmul.f32 %v421, 1.442695
    %v457 = vpow.pop %v456
    %v458 = vmul.f32 %v422, 1.442695
    %v459 = vpow.pop %v458
    %v460 = vmul.f32 %v423, 1.442695
    %v461 = vpow.pop %v460
    %v462 = vmul.f32 %v424, 1.442695
    %v463 = vpow.pop %v462
    %v464 = vmul.f32 %v425, 1.442695
    %v465 = vpow.pop %v464
    %v466 = vmul.f32 %v426, 1.442695
    %v467 = vpow.pop %v466
    %v468 = vmul.f32 %v427, 1.442695
    %v469 = vpow.pop %v468
    %v470 = vmul.f32 %v428, 1.442695
    %v471 = vpow.pop %v470
    %v472 = vmul.f32 %v429, 1.442695
    %v473 = vpow.pop %v472
    %v474 = vmul.f32 %v430, 1.442695
    %v475 = vpow.pop %v474
    %v476 = vmul.f32 %v431, 1.442695
    %v477 = vpow.pop %v476
    %v478 = vmul.f32 %v432, 1.442695
    %v479 = vpow.pop %v478
    %v480 = vmul.f32 %v433, 1.442695
    %v481 = vpow.pop %v480
    %v482 = vmul.f32 %v434, 1.442695
    %v483 = vpow.pop %v482
    %v484 = vmul.f32 %v435, 1.442695
    %v485 = vpow.pop %v484
    %v486 = vmul.f32 %v436, 1.442695
    %v487 = vpow.pop %v486
    %v488 = vmul.f32 %v437, 1.442695
    %v489 = vpow.pop %v488
    %v490 = vmul.f32 %v438, 1.442695
    %v491 = vpow.pop %v490
    %v492 = vmul.f32 %v439, 1.442695
    %v493 = vpow.pop %v492
    %v494 = vmul.f32 %v440, 1.442695
    %v495 = vpow.pop %v494
    %v496 = vmul.f32 %v441, 1.442695
    %v497 = vpow.pop %v496
    %v498 = vmul.f32 %v442, 1.442695
    %v499 = vpow.pop %v498
    %v500 = vmul.f32 %v443, 1.442695
    %v501 = vpow.pop %v500
    %v502 = vmul.f32 %v444, 1.442695
    %v503 = vpow.pop %v502
    %v504 = vmul.f32 %v445, 1.442695
    %v505 = vpow.pop %v504
    %v506 = vmul.f32 %v446, 1.442695
    %v507 = vpow.pop %v506
    %v508 = vmul.f32 %v447, 1.442695
    %v509 = vpow.pop %v508
    %v510 = vmul.f32 %v448, 1.442695
    %v511 = vpow.pop %v510
    %v512 = vmul.f32 %v449, 1.442695
    %v513 = vpow.pop %v512
    %514 = vadd.xlane.f32.xlu0 %v451
    %v515 = vpop.xlane.xlu0 %514
    %516 = vadd.xlane.f32.xlu0 %v453
    %v517 = vpop.xlane.xlu0 %516
    %518 = vadd.xlane.f32.xlu0 %v455
    %v519 = vpop.xlane.xlu0 %518
    %520 = vadd.xlane.f32.xlu0 %v457
    %v521 = vpop.xlane.xlu0 %520
    %522 = vadd.xlane.f32.xlu0 %v459
    %v523 = vpop.xlane.xlu0 %522
    %524 = vadd.xlane.f32.xlu0 %v461
    %v525 = vpop.xlane.xlu0 %524
    %526 = vadd.xlane.f32.xlu0 %v463
    %v527 = vpop.xlane.xlu0 %526
    %528 = vadd.xlane.f32.xlu0 %v465
    %v529 = vpop.xlane.xlu0 %528
    %530 = vadd.xlane.f32.xlu0 %v467
    %v531 = vpop.xlane.xlu0 %530
    %532 = vadd.xlane.f32.xlu0 %v469
    %v533 = vpop.xlane.xlu0 %532
    %534 = vadd.xlane.f32.xlu0 %v471
    %v535 = vpop.xlane.xlu0 %534
    %536 = vadd.xlane.f32.xlu0 %v473
    %v537 = vpop.xlane.xlu0 %536
    %538 = vadd.xlane.f32.xlu0 %v475
    %v539 = vpop.xlane.xlu0 %538
    %540 = vadd.xlane.f32.xlu0 %v477
    %v541 = vpop.xlane.xlu0 %540
    %542 = vadd.xlane.f32.xlu0 %v479
    %v543 = vpop.xlane.xlu0 %542
    %544 = vadd.xlane.f32.xlu0 %v481
    %v545 = vpop.xlane.xlu0 %544
    %546 = vadd.xlane.f32.xlu0 %v483
    %v547 = vpop.xlane.xlu0 %546
    %548 = vadd.xlane.f32.xlu0 %v485
    %v549 = vpop.xlane.xlu0 %548
    %550 = vadd.xlane.f32.xlu0 %v487
    %v551 = vpop.xlane.xlu0 %550
    %552 = vadd.xlane.f32.xlu0 %v489
    %v553 = vpop.xlane.xlu0 %552
    %554 = vadd.xlane.f32.xlu0 %v491
    %v555 = vpop.xlane.xlu0 %554
    %556 = vadd.xlane.f32.xlu0 %v493
    %v557 = vpop.xlane.xlu0 %556
    %558 = vadd.xlane.f32.xlu0 %v495
    %v559 = vpop.xlane.xlu0 %558
    %560 = vadd.xlane.f32.xlu0 %v497
    %v561 = vpop.xlane.xlu0 %560
    %562 = vadd.xlane.f32.xlu0 %v499
    %v563 = vpop.xlane.xlu0 %562
    %564 = vadd.xlane.f32.xlu0 %v501
    %v565 = vpop.xlane.xlu0 %564
    %566 = vadd.xlane.f32.xlu0 %v503
    %v567 = vpop.xlane.xlu0 %566
    %568 = vadd.xlane.f32.xlu0 %v505
    %v569 = vpop.xlane.xlu0 %568
    %570 = vadd.xlane.f32.xlu0 %v507
    %v571 = vpop.xlane.xlu0 %570
    %572 = vadd.xlane.f32.xlu0 %v509
    %v573 = vpop.xlane.xlu0 %572
    %574 = vadd.xlane.f32.xlu0 %v511
    %v575 = vpop.xlane.xlu0 %574
    %576 = vadd.xlane.f32.xlu0 %v513
    %v577 = vpop.xlane.xlu0 %576
    %v578 = vld [vmem:[%s2] sm:$0xff]
    %v579 = vld [vmem:[%s2 + $0x8] sm:$0xff]
    %v580 = vld [vmem:[%s2 + $0x10] sm:$0xff]
    %v581 = vld [vmem:[%s2 + $0x18] sm:$0xff]
    %v582 = vld [vmem:[%s2 + $0x20] sm:$0xff]
    %v583 = vld [vmem:[%s2 + $0x28] sm:$0xff]
    %v584 = vld [vmem:[%s2 + $0x30] sm:$0xff]
    %v585 = vld [vmem:[%s2 + $0x38] sm:$0xff]
    %v586 = vld [vmem:[%s2 + $0x40] sm:$0xff]
    %v587 = vld [vmem:[%s2 + $0x48] sm:$0xff]
    %v588 = vld [vmem:[%s2 + $0x50] sm:$0xff]
    %v589 = vld [vmem:[%s2 + $0x58] sm:$0xff]
    %v590 = vld [vmem:[%s2 + $0x60] sm:$0xff]
    %v591 = vld [vmem:[%s2 + $0x68] sm:$0xff]
    %v592 = vld [vmem:[%s2 + $0x70] sm:$0xff]
    %v593 = vld [vmem:[%s2 + $0x78] sm:$0xff]
    %v594 = vld [vmem:[%s2 + $0x80] sm:$0xff]
    %v595 = vld [vmem:[%s2 + $0x88] sm:$0xff]
    %v596 = vld [vmem:[%s2 + $0x90] sm:$0xff]
    %v597 = vld [vmem:[%s2 + $0x98] sm:$0xff]
    %v598 = vld [vmem:[%s2 + $0xa0] sm:$0xff]
    %v599 = vld [vmem:[%s2 + $0xa8] sm:$0xff]
    %v600 = vld [vmem:[%s2 + $0xb0] sm:$0xff]
    %v601 = vld [vmem:[%s2 + $0xb8] sm:$0xff]
    %v602 = vld [vmem:[%s2 + $0xc0] sm:$0xff]
    %v603 = vld [vmem:[%s2 + $0xc8] sm:$0xff]
    %v604 = vld [vmem:[%s2 + $0xd0] sm:$0xff]
    %v605 = vld [vmem:[%s2 + $0xd8] sm:$0xff]
    %v606 = vld [vmem:[%s2 + $0xe0] sm:$0xff]
    %v607 = vld [vmem:[%s2 + $0xe8] sm:$0xff]
    %v608 = vld [vmem:[%s2 + $0xf0] sm:$0xff]
    %v609 = vld [vmem:[%s2 + $0xf8] sm:$0xff]
    %v610 = vlaneseq
    %v611 = vand.u32 %v610, 127
    %612 = vset.pattern.permute.xlu0 0
    %613 = vperm.xlu0 %612, %v578
    %v614 = vpop.permute.xlu0 %613
    %615 = vset.pattern.permute.xlu0 0
    %616 = vperm.xlu0 %615, %v579
    %v617 = vpop.permute.xlu0 %616
    %618 = vset.pattern.permute.xlu0 0
    %619 = vperm.xlu0 %618, %v580
    %v620 = vpop.permute.xlu0 %619
    %621 = vset.pattern.permute.xlu0 0
    %622 = vperm.xlu0 %621, %v581
    %v623 = vpop.permute.xlu0 %622
    %624 = vset.pattern.permute.xlu0 0
    %625 = vperm.xlu0 %624, %v582
    %v626 = vpop.permute.xlu0 %625
    %627 = vset.pattern.permute.xlu0 0
    %628 = vperm.xlu0 %627, %v583
    %v629 = vpop.permute.xlu0 %628
    %630 = vset.pattern.permute.xlu0 0
    %631 = vperm.xlu0 %630, %v584
    %v632 = vpop.permute.xlu0 %631
    %633 = vset.pattern.permute.xlu0 0
    %634 = vperm.xlu0 %633, %v585
    %v635 = vpop.permute.xlu0 %634
    %636 = vset.pattern.permute.xlu0 0
    %637 = vperm.xlu0 %636, %v586
    %v638 = vpop.permute.xlu0 %637
    %639 = vset.pattern.permute.xlu0 0
    %640 = vperm.xlu0 %639, %v587
    %v641 = vpop.permute.xlu0 %640
    %642 = vset.pattern.permute.xlu0 0
    %643 = vperm.xlu0 %642, %v588
    %v644 = vpop.permute.xlu0 %643
    %645 = vset.pattern.permute.xlu0 0
    %646 = vperm.xlu0 %645, %v589
    %v647 = vpop.permute.xlu0 %646
    %648 = vset.pattern.permute.xlu0 0
    %649 = vperm.xlu0 %648, %v590
    %v650 = vpop.permute.xlu0 %649
    %651 = vset.pattern.permute.xlu0 0
    %652 = vperm.xlu0 %651, %v591
    %v653 = vpop.permute.xlu0 %652
    %654 = vset.pattern.permute.xlu0 0
    %655 = vperm.xlu0 %654, %v592
    %v656 = vpop.permute.xlu0 %655
    %657 = vset.pattern.permute.xlu0 0
    %658 = vperm.xlu0 %657, %v593
    %v659 = vpop.permute.xlu0 %658
    %660 = vset.pattern.permute.xlu0 0
    %661 = vperm.xlu0 %660, %v594
    %v662 = vpop.permute.xlu0 %661
    %663 = vset.pattern.permute.xlu0 0
    %664 = vperm.xlu0 %663, %v595
    %v665 = vpop.permute.xlu0 %664
    %666 = vset.pattern.permute.xlu0 0
    %667 = vperm.xlu0 %666, %v596
    %v668 = vpop.permute.xlu0 %667
    %669 = vset.pattern.permute.xlu0 0
    %670 = vperm.xlu0 %669, %v597
    %v671 = vpop.permute.xlu0 %670
    %672 = vset.pattern.permute.xlu0 0
    %673 = vperm.xlu0 %672, %v598
    %v674 = vpop.permute.xlu0 %673
    %675 = vset.pattern.permute.xlu0 0
    %676 = vperm.xlu0 %675, %v599
    %v677 = vpop.permute.xlu0 %676
    %678 = vset.pattern.permute.xlu0 0
    %679 = vperm.xlu0 %678, %v600
    %v680 = vpop.permute.xlu0 %679
    %681 = vset.pattern.permute.xlu0 0
    %682 = vperm.xlu0 %681, %v601
    %v683 = vpop.permute.xlu0 %682
    %684 = vset.pattern.permute.xlu0 0
    %685 = vperm.xlu0 %684, %v602
    %v686 = vpop.permute.xlu0 %685
    %687 = vset.pattern.permute.xlu0 0
    %688 = vperm.xlu0 %687, %v603
    %v689 = vpop.permute.xlu0 %688
    %690 = vset.pattern.permute.xlu0 0
    %691 = vperm.xlu0 %690, %v604
    %v692 = vpop.permute.xlu0 %691
    %693 = vset.pattern.permute.xlu0 0
    %694 = vperm.xlu0 %693, %v605
    %v695 = vpop.permute.xlu0 %694
    %696 = vset.pattern.permute.xlu0 0
    %697 = vperm.xlu0 %696, %v606
    %v698 = vpop.permute.xlu0 %697
    %699 = vset.pattern.permute.xlu0 0
    %700 = vperm.xlu0 %699, %v607
    %v701 = vpop.permute.xlu0 %700
    %702 = vset.pattern.permute.xlu0 0
    %703 = vperm.xlu0 %702, %v608
    %v704 = vpop.permute.xlu0 %703
    %705 = vset.pattern.permute.xlu0 0
    %706 = vperm.xlu0 %705, %v609
    %v707 = vpop.permute.xlu0 %706
    %vm708 = vcmp.eq.s32.totalorder %v611, %v614
    %vm709 = vcmp.eq.s32.totalorder %v611, %v617
    %vm710 = vcmp.eq.s32.totalorder %v611, %v620
    %vm711 = vcmp.eq.s32.totalorder %v611, %v623
    %vm712 = vcmp.eq.s32.totalorder %v611, %v626
    %vm713 = vcmp.eq.s32.totalorder %v611, %v629
    %vm714 = vcmp.eq.s32.totalorder %v611, %v632
    %vm715 = vcmp.eq.s32.totalorder %v611, %v635
    %vm716 = vcmp.eq.s32.totalorder %v611, %v638
    %vm717 = vcmp.eq.s32.totalorder %v611, %v641
    %vm718 = vcmp.eq.s32.totalorder %v611, %v644
    %vm719 = vcmp.eq.s32.totalorder %v611, %v647
    %vm720 = vcmp.eq.s32.totalorder %v611, %v650
    %vm721 = vcmp.eq.s32.totalorder %v611, %v653
    %vm722 = vcmp.eq.s32.totalorder %v611, %v656
    %vm723 = vcmp.eq.s32.totalorder %v611, %v659
    %vm724 = vcmp.eq.s32.totalorder %v611, %v662
    %vm725 = vcmp.eq.s32.totalorder %v611, %v665
    %vm726 = vcmp.eq.s32.totalorder %v611, %v668
    %vm727 = vcmp.eq.s32.totalorder %v611, %v671
    %vm728 = vcmp.eq.s32.totalorder %v611, %v674
    %vm729 = vcmp.eq.s32.totalorder %v611, %v677
    %vm730 = vcmp.eq.s32.totalorder %v611, %v680
    %vm731 = vcmp.eq.s32.totalorder %v611, %v683
    %vm732 = vcmp.eq.s32.totalorder %v611, %v686
    %vm733 = vcmp.eq.s32.totalorder %v611, %v689
    %vm734 = vcmp.eq.s32.totalorder %v611, %v692
    %vm735 = vcmp.eq.s32.totalorder %v611, %v695
    %vm736 = vcmp.eq.s32.totalorder %v611, %v698
    %vm737 = vcmp.eq.s32.totalorder %v611, %v701
    %vm738 = vcmp.eq.s32.totalorder %v611, %v704
    %vm739 = vcmp.eq.s32.totalorder %v611, %v707
    %v740 = vsel %vm708, %v418, 0.0
    %v741 = vsel %vm709, %v419, 0.0
    %v742 = vsel %vm710, %v420, 0.0
    %v743 = vsel %vm711, %v421, 0.0
    %v744 = vsel %vm712, %v422, 0.0
    %v745 = vsel %vm713, %v423, 0.0
    %v746 = vsel %vm714, %v424, 0.0
    %v747 = vsel %vm715, %v425, 0.0
    %v748 = vsel %vm716, %v426, 0.0
    %v749 = vsel %vm717, %v427, 0.0
    %v750 = vsel %vm718, %v428, 0.0
    %v751 = vsel %vm719, %v429, 0.0
    %v752 = vsel %vm720, %v430, 0.0
    %v753 = vsel %vm721, %v431, 0.0
    %v754 = vsel %vm722, %v432, 0.0
    %v755 = vsel %vm723, %v433, 0.0
    %v756 = vsel %vm724, %v434, 0.0
    %v757 = vsel %vm725, %v435, 0.0
    %v758 = vsel %vm726, %v436, 0.0
    %v759 = vsel %vm727, %v437, 0.0
    %v760 = vsel %vm728, %v438, 0.0
    %v761 = vsel %vm729, %v439, 0.0
    %v762 = vsel %vm730, %v440, 0.0
    %v763 = vsel %vm731, %v441, 0.0
    %v764 = vsel %vm732, %v442, 0.0
    %v765 = vsel %vm733, %v443, 0.0
    %v766 = vsel %vm734, %v444, 0.0
    %v767 = vsel %vm735, %v445, 0.0
    %v768 = vsel %vm736, %v446, 0.0
    %v769 = vsel %vm737, %v447, 0.0
    %v770 = vsel %vm738, %v448, 0.0
    %v771 = vsel %vm739, %v449, 0.0
    %772 = vadd.xlane.f32.xlu0 %v740
    %v773 = vpop.xlane.xlu0 %772
    %774 = vadd.xlane.f32.xlu0 %v741
    %v775 = vpop.xlane.xlu0 %774
    %776 = vadd.xlane.f32.xlu0 %v742
    %v777 = vpop.xlane.xlu0 %776
    %778 = vadd.xlane.f32.xlu0 %v743
    %v779 = vpop.xlane.xlu0 %778
    %780 = vadd.xlane.f32.xlu0 %v744
    %v781 = vpop.xlane.xlu0 %780
    %782 = vadd.xlane.f32.xlu0 %v745
    %v783 = vpop.xlane.xlu0 %782
    %784 = vadd.xlane.f32.xlu0 %v746
    %v785 = vpop.xlane.xlu0 %784
    %786 = vadd.xlane.f32.xlu0 %v747
    %v787 = vpop.xlane.xlu0 %786
    %788 = vadd.xlane.f32.xlu0 %v748
    %v789 = vpop.xlane.xlu0 %788
    %790 = vadd.xlane.f32.xlu0 %v749
    %v791 = vpop.xlane.xlu0 %790
    %792 = vadd.xlane.f32.xlu0 %v750
    %v793 = vpop.xlane.xlu0 %792
    %794 = vadd.xlane.f32.xlu0 %v751
    %v795 = vpop.xlane.xlu0 %794
    %796 = vadd.xlane.f32.xlu0 %v752
    %v797 = vpop.xlane.xlu0 %796
    %798 = vadd.xlane.f32.xlu0 %v753
    %v799 = vpop.xlane.xlu0 %798
    %800 = vadd.xlane.f32.xlu0 %v754
    %v801 = vpop.xlane.xlu0 %800
    %802 = vadd.xlane.f32.xlu0 %v755
    %v803 = vpop.xlane.xlu0 %802
    %804 = vadd.xlane.f32.xlu0 %v756
    %v805 = vpop.xlane.xlu0 %804
    %806 = vadd.xlane.f32.xlu0 %v757
    %v807 = vpop.xlane.xlu0 %806
    %808 = vadd.xlane.f32.xlu0 %v758
    %v809 = vpop.xlane.xlu0 %808
    %810 = vadd.xlane.f32.xlu0 %v759
    %v811 = vpop.xlane.xlu0 %810
    %812 = vadd.xlane.f32.xlu0 %v760
    %v813 = vpop.xlane.xlu0 %812
    %814 = vadd.xlane.f32.xlu0 %v761
    %v815 = vpop.xlane.xlu0 %814
    %816 = vadd.xlane.f32.xlu0 %v762
    %v817 = vpop.xlane.xlu0 %816
    %818 = vadd.xlane.f32.xlu0 %v763
    %v819 = vpop.xlane.xlu0 %818
    %820 = vadd.xlane.f32.xlu0 %v764
    %v821 = vpop.xlane.xlu0 %820
    %822 = vadd.xlane.f32.xlu0 %v765
    %v823 = vpop.xlane.xlu0 %822
    %824 = vadd.xlane.f32.xlu0 %v766
    %v825 = vpop.xlane.xlu0 %824
    %826 = vadd.xlane.f32.xlu0 %v767
    %v827 = vpop.xlane.xlu0 %826
    %828 = vadd.xlane.f32.xlu0 %v768
    %v829 = vpop.xlane.xlu0 %828
    %830 = vadd.xlane.f32.xlu0 %v769
    %v831 = vpop.xlane.xlu0 %830
    %832 = vadd.xlane.f32.xlu0 %v770
    %v833 = vpop.xlane.xlu0 %832
    %834 = vadd.xlane.f32.xlu0 %v771
    %v835 = vpop.xlane.xlu0 %834
    %v836 = vlog2.pop %v515
    %v837 = vmul.f32 %v836, 0.6931472
    %v838 = vlog2.pop %v517
    %v839 = vmul.f32 %v838, 0.6931472
    %v840 = vlog2.pop %v519
    %v841 = vmul.f32 %v840, 0.6931472
    %v842 = vlog2.pop %v521
    %v843 = vmul.f32 %v842, 0.6931472
    %v844 = vlog2.pop %v523
    %v845 = vmul.f32 %v844, 0.6931472
    %v846 = vlog2.pop %v525
    %v847 = vmul.f32 %v846, 0.6931472
    %v848 = vlog2.pop %v527
    %v849 = vmul.f32 %v848, 0.6931472
    %v850 = vlog2.pop %v529
    %v851 = vmul.f32 %v850, 0.6931472
    %v852 = vlog2.pop %v531
    %v853 = vmul.f32 %v852, 0.6931472
    %v854 = vlog2.pop %v533
    %v855 = vmul.f32 %v854, 0.6931472
    %v856 = vlog2.pop %v535
    %v857 = vmul.f32 %v856, 0.6931472
    %v858 = vlog2.pop %v537
    %v859 = vmul.f32 %v858, 0.6931472
    %v860 = vlog2.pop %v539
    %v861 = vmul.f32 %v860, 0.6931472
    %v862 = vlog2.pop %v541
    %v863 = vmul.f32 %v862, 0.6931472
    %v864 = vlog2.pop %v543
    %v865 = vmul.f32 %v864, 0.6931472
    %v866 = vlog2.pop %v545
    %v867 = vmul.f32 %v866, 0.6931472
    %v868 = vlog2.pop %v547
    %v869 = vmul.f32 %v868, 0.6931472
    %v870 = vlog2.pop %v549
    %v871 = vmul.f32 %v870, 0.6931472
    %v872 = vlog2.pop %v551
    %v873 = vmul.f32 %v872, 0.6931472
    %v874 = vlog2.pop %v553
    %v875 = vmul.f32 %v874, 0.6931472
    %v876 = vlog2.pop %v555
    %v877 = vmul.f32 %v876, 0.6931472
    %v878 = vlog2.pop %v557
    %v879 = vmul.f32 %v878, 0.6931472
    %v880 = vlog2.pop %v559
    %v881 = vmul.f32 %v880, 0.6931472
    %v882 = vlog2.pop %v561
    %v883 = vmul.f32 %v882, 0.6931472
    %v884 = vlog2.pop %v563
    %v885 = vmul.f32 %v884, 0.6931472
    %v886 = vlog2.pop %v565
    %v887 = vmul.f32 %v886, 0.6931472
    %v888 = vlog2.pop %v567
    %v889 = vmul.f32 %v888, 0.6931472
    %v890 = vlog2.pop %v569
    %v891 = vmul.f32 %v890, 0.6931472
    %v892 = vlog2.pop %v571
    %v893 = vmul.f32 %v892, 0.6931472
    %v894 = vlog2.pop %v573
    %v895 = vmul.f32 %v894, 0.6931472
    %v896 = vlog2.pop %v575
    %v897 = vmul.f32 %v896, 0.6931472
    %v898 = vlog2.pop %v577
    %v899 = vmul.f32 %v898, 0.6931472
    %v900 = vsub.f32 %v837, %v773
    %v901 = vsub.f32 %v839, %v775
    %v902 = vsub.f32 %v841, %v777
    %v903 = vsub.f32 %v843, %v779
    %v904 = vsub.f32 %v845, %v781
    %v905 = vsub.f32 %v847, %v783
    %v906 = vsub.f32 %v849, %v785
    %v907 = vsub.f32 %v851, %v787
    %v908 = vsub.f32 %v853, %v789
    %v909 = vsub.f32 %v855, %v791
    %v910 = vsub.f32 %v857, %v793
    %v911 = vsub.f32 %v859, %v795
    %v912 = vsub.f32 %v861, %v797
    %v913 = vsub.f32 %v863, %v799
    %v914 = vsub.f32 %v865, %v801
    %v915 = vsub.f32 %v867, %v803
    %v916 = vsub.f32 %v869, %v805
    %v917 = vsub.f32 %v871, %v807
    %v918 = vsub.f32 %v873, %v809
    %v919 = vsub.f32 %v875, %v811
    %v920 = vsub.f32 %v877, %v813
    %v921 = vsub.f32 %v879, %v815
    %v922 = vsub.f32 %v881, %v817
    %v923 = vsub.f32 %v883, %v819
    %v924 = vsub.f32 %v885, %v821
    %v925 = vsub.f32 %v887, %v823
    %v926 = vsub.f32 %v889, %v825
    %v927 = vsub.f32 %v891, %v827
    %v928 = vsub.f32 %v893, %v829
    %v929 = vsub.f32 %v895, %v831
    %v930 = vsub.f32 %v897, %v833
    %v931 = vsub.f32 %v899, %v835
    %v932 = vlaneseq
    %v933 = vshrl.u32 %v932, 7
    %v934 = vadd.s32 %v933, 8
    %v935 = vadd.s32 %v933, 16
    %v936 = vadd.s32 %v933, 24
    %v937 = vadd.s32 %v933, 32
    %v938 = vadd.s32 %v933, 40
    %v939 = vadd.s32 %v933, 48
    %v940 = vadd.s32 %v933, 56
    %v941 = vadd.s32 %v933, 64
    %v942 = vadd.s32 %v933, 72
    %v943 = vadd.s32 %v933, 80
    %v944 = vadd.s32 %v933, 88
    %v945 = vadd.s32 %v933, 96
    %v946 = vadd.s32 %v933, 104
    %v947 = vadd.s32 %v933, 112
    %v948 = vadd.s32 %v933, 120
    %v949 = vadd.s32 %v933, 128
    %v950 = vadd.s32 %v933, 136
    %v951 = vadd.s32 %v933, 144
    %v952 = vadd.s32 %v933, 152
    %v953 = vadd.s32 %v933, 160
    %v954 = vadd.s32 %v933, 168
    %v955 = vadd.s32 %v933, 176
    %v956 = vadd.s32 %v933, 184
    %v957 = vadd.s32 %v933, 192
    %v958 = vadd.s32 %v933, 200
    %v959 = vadd.s32 %v933, 208
    %v960 = vadd.s32 %v933, 216
    %v961 = vadd.s32 %v933, 224
    %v962 = vadd.s32 %v933, 232
    %v963 = vadd.s32 %v933, 240
    %v964 = vadd.s32 %v933, 248
    %s965 = smul.u32 0, 256
    %v966 = vstv %s965
    %v967 = vadd.s32 %v966, %v933
    %v968 = vadd.s32 %v966, %v934
    %v969 = vadd.s32 %v966, %v935
    %v970 = vadd.s32 %v966, %v936
    %v971 = vadd.s32 %v966, %v937
    %v972 = vadd.s32 %v966, %v938
    %v973 = vadd.s32 %v966, %v939
    %v974 = vadd.s32 %v966, %v940
    %v975 = vadd.s32 %v966, %v941
    %v976 = vadd.s32 %v966, %v942
    %v977 = vadd.s32 %v966, %v943
    %v978 = vadd.s32 %v966, %v944
    %v979 = vadd.s32 %v966, %v945
    %v980 = vadd.s32 %v966, %v946
    %v981 = vadd.s32 %v966, %v947
    %v982 = vadd.s32 %v966, %v948
    %v983 = vadd.s32 %v966, %v949
    %v984 = vadd.s32 %v966, %v950
    %v985 = vadd.s32 %v966, %v951
    %v986 = vadd.s32 %v966, %v952
    %v987 = vadd.s32 %v966, %v953
    %v988 = vadd.s32 %v966, %v954
    %v989 = vadd.s32 %v966, %v955
    %v990 = vadd.s32 %v966, %v956
    %v991 = vadd.s32 %v966, %v957
    %v992 = vadd.s32 %v966, %v958
    %v993 = vadd.s32 %v966, %v959
    %v994 = vadd.s32 %v966, %v960
    %v995 = vadd.s32 %v966, %v961
    %v996 = vadd.s32 %v966, %v962
    %v997 = vadd.s32 %v966, %v963
    %v998 = vadd.s32 %v966, %v964
    %vm999 = vcmp.lt.s32.totalorder %v967, 16
    %vm1000 = vcmp.lt.s32.totalorder %v968, 16
    %vm1001 = vcmp.lt.s32.totalorder %v969, 16
    %vm1002 = vcmp.lt.s32.totalorder %v970, 16
    %vm1003 = vcmp.lt.s32.totalorder %v971, 16
    %vm1004 = vcmp.lt.s32.totalorder %v972, 16
    %vm1005 = vcmp.lt.s32.totalorder %v973, 16
    %vm1006 = vcmp.lt.s32.totalorder %v974, 16
    %vm1007 = vcmp.lt.s32.totalorder %v975, 16
    %vm1008 = vcmp.lt.s32.totalorder %v976, 16
    %vm1009 = vcmp.lt.s32.totalorder %v977, 16
    %vm1010 = vcmp.lt.s32.totalorder %v978, 16
    %vm1011 = vcmp.lt.s32.totalorder %v979, 16
    %vm1012 = vcmp.lt.s32.totalorder %v980, 16
    %vm1013 = vcmp.lt.s32.totalorder %v981, 16
    %vm1014 = vcmp.lt.s32.totalorder %v982, 16
    %vm1015 = vcmp.lt.s32.totalorder %v983, 16
    %vm1016 = vcmp.lt.s32.totalorder %v984, 16
    %vm1017 = vcmp.lt.s32.totalorder %v985, 16
    %vm1018 = vcmp.lt.s32.totalorder %v986, 16
    %vm1019 = vcmp.lt.s32.totalorder %v987, 16
    %vm1020 = vcmp.lt.s32.totalorder %v988, 16
    %vm1021 = vcmp.lt.s32.totalorder %v989, 16
    %vm1022 = vcmp.lt.s32.totalorder %v990, 16
    %vm1023 = vcmp.lt.s32.totalorder %v991, 16
    %vm1024 = vcmp.lt.s32.totalorder %v992, 16
    %vm1025 = vcmp.lt.s32.totalorder %v993, 16
    %vm1026 = vcmp.lt.s32.totalorder %v994, 16
    %vm1027 = vcmp.lt.s32.totalorder %v995, 16
    %vm1028 = vcmp.lt.s32.totalorder %v996, 16
    %vm1029 = vcmp.lt.s32.totalorder %v997, 16
    %vm1030 = vcmp.lt.s32.totalorder %v998, 16
    %vm1031 = vcmp.ne.s32.totalorder %v578, 4294967196
    %vm1032 = vcmp.ne.s32.totalorder %v579, 4294967196
    %vm1033 = vcmp.ne.s32.totalorder %v580, 4294967196
    %vm1034 = vcmp.ne.s32.totalorder %v581, 4294967196
    %vm1035 = vcmp.ne.s32.totalorder %v582, 4294967196
    %vm1036 = vcmp.ne.s32.totalorder %v583, 4294967196
    %vm1037 = vcmp.ne.s32.totalorder %v584, 4294967196
    %vm1038 = vcmp.ne.s32.totalorder %v585, 4294967196
    %vm1039 = vcmp.ne.s32.totalorder %v586, 4294967196
    %vm1040 = vcmp.ne.s32.totalorder %v587, 4294967196
    %vm1041 = vcmp.ne.s32.totalorder %v588, 4294967196
    %vm1042 = vcmp.ne.s32.totalorder %v589, 4294967196
    %vm1043 = vcmp.ne.s32.totalorder %v590, 4294967196
    %vm1044 = vcmp.ne.s32.totalorder %v591, 4294967196
    %vm1045 = vcmp.ne.s32.totalorder %v592, 4294967196
    %vm1046 = vcmp.ne.s32.totalorder %v593, 4294967196
    %vm1047 = vcmp.ne.s32.totalorder %v594, 4294967196
    %vm1048 = vcmp.ne.s32.totalorder %v595, 4294967196
    %vm1049 = vcmp.ne.s32.totalorder %v596, 4294967196
    %vm1050 = vcmp.ne.s32.totalorder %v597, 4294967196
    %vm1051 = vcmp.ne.s32.totalorder %v598, 4294967196
    %vm1052 = vcmp.ne.s32.totalorder %v599, 4294967196
    %vm1053 = vcmp.ne.s32.totalorder %v600, 4294967196
    %vm1054 = vcmp.ne.s32.totalorder %v601, 4294967196
    %vm1055 = vcmp.ne.s32.totalorder %v602, 4294967196
    %vm1056 = vcmp.ne.s32.totalorder %v603, 4294967196
    %vm1057 = vcmp.ne.s32.totalorder %v604, 4294967196
    %vm1058 = vcmp.ne.s32.totalorder %v605, 4294967196
    %vm1059 = vcmp.ne.s32.totalorder %v606, 4294967196
    %vm1060 = vcmp.ne.s32.totalorder %v607, 4294967196
    %vm1061 = vcmp.ne.s32.totalorder %v608, 4294967196
    %vm1062 = vcmp.ne.s32.totalorder %v609, 4294967196
    %vm1063 = vmand %vm999, %vm1031
    %vm1064 = vmand %vm1000, %vm1032
    %vm1065 = vmand %vm1001, %vm1033
    %vm1066 = vmand %vm1002, %vm1034
    %vm1067 = vmand %vm1003, %vm1035
    %vm1068 = vmand %vm1004, %vm1036
    %vm1069 = vmand %vm1005, %vm1037
    %vm1070 = vmand %vm1006, %vm1038
    %vm1071 = vmand %vm1007, %vm1039
    %vm1072 = vmand %vm1008, %vm1040
    %vm1073 = vmand %vm1009, %vm1041
    %vm1074 = vmand %vm1010, %vm1042
    %vm1075 = vmand %vm1011, %vm1043
    %vm1076 = vmand %vm1012, %vm1044
    %vm1077 = vmand %vm1013, %vm1045
    %vm1078 = vmand %vm1014, %vm1046
    %vm1079 = vmand %vm1015, %vm1047
    %vm1080 = vmand %vm1016, %vm1048
    %vm1081 = vmand %vm1017, %vm1049
    %vm1082 = vmand %vm1018, %vm1050
    %vm1083 = vmand %vm1019, %vm1051
    %vm1084 = vmand %vm1020, %vm1052
    %vm1085 = vmand %vm1021, %vm1053
    %vm1086 = vmand %vm1022, %vm1054
    %vm1087 = vmand %vm1023, %vm1055
    %vm1088 = vmand %vm1024, %vm1056
    %vm1089 = vmand %vm1025, %vm1057
    %vm1090 = vmand %vm1026, %vm1058
    %vm1091 = vmand %vm1027, %vm1059
    %vm1092 = vmand %vm1028, %vm1060
    %vm1093 = vmand %vm1029, %vm1061
    %vm1094 = vmand %vm1030, %vm1062
    %v1095 = vsel %vm1063, %v900, 0.0
    %v1096 = vsel %vm1064, %v901, 0.0
    %v1097 = vsel %vm1065, %v902, 0.0
    %v1098 = vsel %vm1066, %v903, 0.0
    %v1099 = vsel %vm1067, %v904, 0.0
    %v1100 = vsel %vm1068, %v905, 0.0
    %v1101 = vsel %vm1069, %v906, 0.0
    %v1102 = vsel %vm1070, %v907, 0.0
    %v1103 = vsel %vm1071, %v908, 0.0
    %v1104 = vsel %vm1072, %v909, 0.0
    %v1105 = vsel %vm1073, %v910, 0.0
    %v1106 = vsel %vm1074, %v911, 0.0
    %v1107 = vsel %vm1075, %v912, 0.0
    %v1108 = vsel %vm1076, %v913, 0.0
    %v1109 = vsel %vm1077, %v914, 0.0
    %v1110 = vsel %vm1078, %v915, 0.0
    %v1111 = vsel %vm1079, %v916, 0.0
    %v1112 = vsel %vm1080, %v917, 0.0
    %v1113 = vsel %vm1081, %v918, 0.0
    %v1114 = vsel %vm1082, %v919, 0.0
    %v1115 = vsel %vm1083, %v920, 0.0
    %v1116 = vsel %vm1084, %v921, 0.0
    %v1117 = vsel %vm1085, %v922, 0.0
    %v1118 = vsel %vm1086, %v923, 0.0
    %v1119 = vsel %vm1087, %v924, 0.0
    %v1120 = vsel %vm1088, %v925, 0.0
    %v1121 = vsel %vm1089, %v926, 0.0
    %v1122 = vsel %vm1090, %v927, 0.0
    %v1123 = vsel %vm1091, %v928, 0.0
    %v1124 = vsel %vm1092, %v929, 0.0
    %v1125 = vsel %vm1093, %v930, 0.0
    %v1126 = vsel %vm1094, %v931, 0.0
    %vm1127 = vcmask 7168
    %v1128 = vsel %vm1127, %v1095, 0.0
    %v1129 = vsel %vm1127, %v1096, 0.0
    %v1130 = vadd.f32 %v1128, %v1129
    %v1131 = vsel %vm1127, %v1097, 0.0
    %v1132 = vadd.f32 %v1130, %v1131
    %v1133 = vsel %vm1127, %v1098, 0.0
    %v1134 = vadd.f32 %v1132, %v1133
    %v1135 = vsel %vm1127, %v1099, 0.0
    %v1136 = vadd.f32 %v1134, %v1135
    %v1137 = vsel %vm1127, %v1100, 0.0
    %v1138 = vadd.f32 %v1136, %v1137
    %v1139 = vsel %vm1127, %v1101, 0.0
    %v1140 = vadd.f32 %v1138, %v1139
    %v1141 = vsel %vm1127, %v1102, 0.0
    %v1142 = vadd.f32 %v1140, %v1141
    %v1143 = vsel %vm1127, %v1103, 0.0
    %v1144 = vadd.f32 %v1142, %v1143
    %v1145 = vsel %vm1127, %v1104, 0.0
    %v1146 = vadd.f32 %v1144, %v1145
    %v1147 = vsel %vm1127, %v1105, 0.0
    %v1148 = vadd.f32 %v1146, %v1147
    %v1149 = vsel %vm1127, %v1106, 0.0
    %v1150 = vadd.f32 %v1148, %v1149
    %v1151 = vsel %vm1127, %v1107, 0.0
    %v1152 = vadd.f32 %v1150, %v1151
    %v1153 = vsel %vm1127, %v1108, 0.0
    %v1154 = vadd.f32 %v1152, %v1153
    %v1155 = vsel %vm1127, %v1109, 0.0
    %v1156 = vadd.f32 %v1154, %v1155
    %v1157 = vsel %vm1127, %v1110, 0.0
    %v1158 = vadd.f32 %v1156, %v1157
    %v1159 = vsel %vm1127, %v1111, 0.0
    %v1160 = vadd.f32 %v1158, %v1159
    %v1161 = vsel %vm1127, %v1112, 0.0
    %v1162 = vadd.f32 %v1160, %v1161
    %v1163 = vsel %vm1127, %v1113, 0.0
    %v1164 = vadd.f32 %v1162, %v1163
    %v1165 = vsel %vm1127, %v1114, 0.0
    %v1166 = vadd.f32 %v1164, %v1165
    %v1167 = vsel %vm1127, %v1115, 0.0
    %v1168 = vadd.f32 %v1166, %v1167
    %v1169 = vsel %vm1127, %v1116, 0.0
    %v1170 = vadd.f32 %v1168, %v1169
    %v1171 = vsel %vm1127, %v1117, 0.0
    %v1172 = vadd.f32 %v1170, %v1171
    %v1173 = vsel %vm1127, %v1118, 0.0
    %v1174 = vadd.f32 %v1172, %v1173
    %v1175 = vsel %vm1127, %v1119, 0.0
    %v1176 = vadd.f32 %v1174, %v1175
    %v1177 = vsel %vm1127, %v1120, 0.0
    %v1178 = vadd.f32 %v1176, %v1177
    %v1179 = vsel %vm1127, %v1121, 0.0
    %v1180 = vadd.f32 %v1178, %v1179
    %v1181 = vsel %vm1127, %v1122, 0.0
    %v1182 = vadd.f32 %v1180, %v1181
    %v1183 = vsel %vm1127, %v1123, 0.0
    %v1184 = vadd.f32 %v1182, %v1183
    %v1185 = vsel %vm1127, %v1124, 0.0
    %v1186 = vadd.f32 %v1184, %v1185
    %v1187 = vsel %vm1127, %v1125, 0.0
    %v1188 = vadd.f32 %v1186, %v1187
    %v1189 = vsel %vm1127, %v1126, 0.0
    %v1190 = vadd.f32 %v1188, %v1189
    %1191 = vadd.xlane.f32.xlu0 %v1190
    %v1192 = vpop.xlane.xlu0 %1191
    %v1193 = vrot.slane %v1192, 4
    %v1194 = vadd.f32 %v1192, %v1193
    %v1195 = vrot.slane %v1194, 2
    %v1196 = vadd.f32 %v1194, %v1195
    %v1197 = vrot.slane %v1196, 1
    %v1198 = vadd.f32 %v1196, %v1197
    %s1199 = vtos %v1198
    %v1200 = vstv %s1199
    %1201 = vst [vmem:[#allocation2] sm:$0xff] %v1200
    // Predicated region
    $region14: #{tpu_custom_call.1} parent=1 // pred_check
      _
    $region15: #{tpu_custom_call.1} parent=1 // pred_check_branch
      %1203 = sbr.rel (0) target = $region17
    $region16: #{tpu_custom_call.1} parent=1 // pred_region
      %s1205 = ssub.s32 128, 128
      %1206 = vsyncadd [#allocation3], %s1205
      %s1208 = sshll.u32 [#allocation2], 4
      %s1209 = int_to_ptr.vmem [resolvable:$true] %s1208
      %1211 = dma.vmem_to_hbm [thread:$0]  %s1209, 128, %s3, [#allocation3]
    $region17: #{tpu_custom_call.1} parent=1 // pred_fallthru
      _
    // Predicated region
    $region18: #{tpu_custom_call.1} parent=1 // pred_check
      _
    $region19: #{tpu_custom_call.1} parent=1 // pred_check_branch
      %1213 = sbr.rel (0) target = $region21
    $region20: #{tpu_custom_call.1} parent=1 // pred_region
      %1214 = dma.done [#allocation3], 128
    $region21: #{tpu_custom_call.1} parent=1 // pred_fallthru
      _
    %1215 = vsyncpa [#allocation3], 1

</llo_original>
